<compile_context>
chip_gen: v7x
topology: tpu7x:2x2x1
jax: 0.10.0
libtpu: 0.0.40
codegen_flags: <defaults>
</compile_context>

<pallas_src>
from functools import partial

import jax
import jax.numpy as jnp
from jax.experimental import pallas as pl
from jax.experimental.pallas import tpu as pltpu

NEG_BIG = -9.0e15  # matches the PyTorch reference's -9e15 mask constant


def _round_up(n, m):
    return ((n + m - 1) // m) * m


def _pick_tile(n, cap):
    """Largest lane-friendly tile <= cap that divides n.  Falls back to the full
    dimension only for small graphs (legal: block equals the full array dim)."""
    for c in (2048, 1024, 512, 256, 128):
        if c <= cap and n % c == 0:
            return c
    return n


# ---------------------------------------------------------------------------
# Kernel 1: fused projection  h_all = x @ W_all ,  f1/f2 attention scalars
# ---------------------------------------------------------------------------
def gat_project_kernel(x_ref, w_ref, aq_ref, ak_ref,
                       h_ref, f1_ref, f2_ref, *, num_heads, head_dim):
    # x_ref : (TR, Fin)   w_ref : (Fin, H*D)   aq/ak_ref : (H, D)
    # h_ref : (TR, H*D) [pv dtype]   f1/f2_ref : (TR, H) f32
    h_all = jnp.dot(x_ref[...], w_ref[...], preferred_element_type=jnp.float32)
    h_ref[...] = h_all.astype(h_ref.dtype)      # bf16 storage: MXU-friendly hv
    for hh in range(num_heads):
        lo = hh * head_dim
        h_h = h_all[:, lo:lo + head_dim]                       # (TR, D), f32
        # f1_i = <h_i, a1>, f2_j = <h_j, a2>  (VPU reductions, f32 accuracy)
        f1_ref[:, hh:hh + 1] = jnp.sum(h_h * aq_ref[hh:hh + 1, :],
                                       axis=1, keepdims=True)
        f2_ref[:, hh:hh + 1] = jnp.sum(h_h * ak_ref[hh:hh + 1, :],
                                       axis=1, keepdims=True)


# ---------------------------------------------------------------------------
# Kernel 2: tiled online-softmax attention, all heads per adjacency tile
# ---------------------------------------------------------------------------
def gat_attention_kernel(adj_ref, f1_ref, f2t_ref, hv_ref, out_ref,
                         m_sc, l_sc, acc_sc, *,
                         alpha, num_heads, head_dim, kv_tile, hv_resident,
                         approx_recip):
    # adj_ref : (TQ, TK) int8    f1_ref : (TQ, H)    f2t_ref : (H, TK)
    # hv_ref  : (TK, H*D) or (N_pad, H*D) when resident     out_ref: (TQ, H*D)
    # scratch : m_sc/l_sc (TQ, H) f32, acc_sc (TQ, H*D) f32  (online softmax)
    k = pl.program_id(1)

    @pl.when(k == 0)
    def _init():
        m_sc[...] = jnp.full(m_sc.shape, NEG_BIG, dtype=m_sc.dtype)
        l_sc[...] = jnp.zeros(l_sc.shape, dtype=l_sc.dtype)
        acc_sc[...] = jnp.zeros(acc_sc.shape, dtype=acc_sc.dtype)

    # adjacency mask: once per (i,k) block, shared by all heads, no f32 cast.
    mask = adj_ref[...] > 0

    if hv_resident:
        # hv lives fully in VMEM; grab this kv tile's rows once per grid step.
        row0 = pl.multiple_of(k * kv_tile, kv_tile)
        v_blk = hv_ref[pl.ds(row0, kv_tile), :]          # (TK, H*D)
    else:
        v_blk = None

    # TODO(synk): review suggested lax.fori_loop(unroll=True) over heads; that
    # requires dynamic lane-offset stores into m/l/acc scratch (lowering risk),
    # and with H <= 8 the static loop's temp footprint fits VMEM comfortably.
    for hh in range(num_heads):
        lo = hh * head_dim
        f1_col = f1_ref[:, hh:hh + 1]          # (TQ, 1)
        f2_row = f2t_ref[hh:hh + 1, :]         # (1, TK)
        e = f1_col + f2_row                    # (TQ, TK)
        if 0.0 <= alpha < 1.0:
            e = jnp.maximum(e, alpha * e)      # LeakyReLU without compare+select
        else:
            e = jnp.where(e > 0, e, alpha * e)
        s = jnp.where(mask, e, NEG_BIG)        # keep reference's -9e15 semantics

        m_prev = m_sc[:, hh:hh + 1]
        m_new = jnp.maximum(m_prev, jnp.max(s, axis=1, keepdims=True))
        corr = jnp.exp(m_prev - m_new)
        p = jnp.exp(s - m_new)                 # (TQ, TK) f32

        if hv_resident:
            v_h = v_blk[:, lo:lo + head_dim]            # (TK, D)
        else:
            v_h = hv_ref[:, lo:lo + head_dim]           # (TK, D)

        l_sc[:, hh:hh + 1] = corr * l_sc[:, hh:hh + 1] + jnp.sum(
            p, axis=1, keepdims=True)
        # bf16 x bf16 -> f32 MXU pass (single pass vs emulated f32 dot).
        acc_sc[:, lo:lo + head_dim] = (
            corr * acc_sc[:, lo:lo + head_dim]
            + jnp.dot(p.astype(v_h.dtype), v_h,
                      preferred_element_type=jnp.float32))
        m_sc[:, hh:hh + 1] = m_new

    @pl.when(k == pl.num_programs(1) - 1)
    def _finalize():
        # approx reciprocal rides the idle EUP slot on the bf16 path; exact on
        # the f32 path so tight tolerances hold.
        inv_l = pl.reciprocal(l_sc[...], approx=approx_recip)   # (TQ, H)
        for hh in range(num_heads):
            lo = hh * head_dim
            out_ref[:, lo:lo + head_dim] = (
                acc_sc[:, lo:lo + head_dim] * inv_l[:, hh:hh + 1])


# ---------------------------------------------------------------------------
# Wrapper
# ---------------------------------------------------------------------------
def multi_head_gat(x, adj, W, A, alpha=0.2, pv_dtype=jnp.bfloat16):
    """x:(N,Fin) f32, adj:(N,N) (>0 == edge; int8/bool preferred), W:(H,Fin,D),
    A:(H,2D,1)  ->  (N, H*D) f32  (== torch.cat(head_outputs, dim=1), eval).

    pv_dtype: dtype of the stored h values / PV matmul inputs.  bf16 (default)
    is the fast MXU path; f32 reproduces the reference to ~1e-5."""
    N, Fin = x.shape
    H, _, D = W.shape
    HD = H * D
    pv_dtype = jnp.dtype(pv_dtype)
    approx_recip = pv_dtype != jnp.dtype(jnp.float32)

    # Fused, lane-dense projection weights and lane-friendly attention vectors.
    w_all = jnp.transpose(W, (1, 0, 2)).reshape(Fin, HD)   # (Fin, H*D)
    a_q = A[:, :D, 0]                                      # (H, D)
    a_k = A[:, D:, 0]                                      # (H, D)

    # Adjacency as an int8 mask.  Callers should pre-store / reuse an int8 or
    # bool adjacency across layers (perf review: the conversion itself costs
    # 5*N^2 bytes of HBM traffic); the cast below is only a fallback.
    if adj.dtype == jnp.int8:
        adj_i8 = adj
    elif adj.dtype == jnp.bool_:
        adj_i8 = adj.astype(jnp.int8)
    else:
        adj_i8 = (adj > 0).astype(jnp.int8)

    # Pad N up to a lane-friendly size for large graphs (avoids the full-N
    # single-block cliff for non-divisible N).  Small graphs run as one block.
    if N % 128 == 0 or N <= 512:
        n_pad = N
    else:
        n_pad = _round_up(N, 128)
    # TODO(synk): when padding is active, a node with zero real neighbors sees
    # n_pad (not N) uniform-softmax columns; differs from the reference only
    # for fully isolated nodes in non-128-multiple graphs.
    if n_pad != N:
        x_p = jnp.pad(x, ((0, n_pad - N), (0, 0)))
        adj_p = jnp.pad(adj_i8, ((0, n_pad - N), (0, n_pad - N)))
    else:
        x_p, adj_p = x, adj_i8

    # ---- Kernel 1: fused projection (h_all, f1, f2) ----------------------
    TR = _pick_tile(n_pad, 512)
    h_all, f1, f2 = pl.pallas_call(
        partial(gat_project_kernel, num_heads=H, head_dim=D),
        out_shape=(jax.ShapeDtypeStruct((n_pad, HD), pv_dtype),
                   jax.ShapeDtypeStruct((n_pad, H), jnp.float32),
                   jax.ShapeDtypeStruct((n_pad, H), jnp.float32)),
        grid_spec=pltpu.PrefetchScalarGridSpec(
            num_scalar_prefetch=0,
            grid=(n_pad // TR,),
            in_specs=[
                pl.BlockSpec((TR, Fin), lambda i: (i, 0)),
                pl.BlockSpec((Fin, HD), lambda i: (0, 0)),
                pl.BlockSpec((H, D), lambda i: (0, 0)),
                pl.BlockSpec((H, D), lambda i: (0, 0)),
            ],
            out_specs=[
                pl.BlockSpec((TR, HD), lambda i: (i, 0)),
                pl.BlockSpec((TR, H), lambda i: (i, 0)),
                pl.BlockSpec((TR, H), lambda i: (i, 0)),
            ],
        ),
        compiler_params=pltpu.CompilerParams(
            dimension_semantics=("parallel",)),
    )(x_p, w_all, a_q, a_k)

    # (H, N) layout so the attention kernel reads f2 as a clean (1, TK) lane row.
    f2t = f2.T

    # ---- Kernel 2: tiled online-softmax attention ------------------------
    # Tile plan safe for every generation (v7x: 64 MiB phys / 32 MiB scoped):
    # TQ=256 keeps nq >= 2 (2-TC sharding) for N >= 512; TK up to 1024 keeps the
    # per-step f32 score temporaries around 4-5 MiB.
    TQ = _pick_tile(n_pad, 256)
    TK = _pick_tile(n_pad, 1024)
    nq, nk = n_pad // TQ, n_pad // TK

    hv_bytes = n_pad * HD * pv_dtype.itemsize
    hv_resident = hv_bytes <= 8 * 1024 * 1024   # fits comfortably even on v7x
    if hv_resident:
        hv_spec = pl.BlockSpec((n_pad, HD), lambda i, k: (0, 0))   # loaded once
    else:
        hv_spec = pl.BlockSpec((TK, HD), lambda i, k: (k, 0))      # streamed

    cost = pl.CostEstimate(
        flops=int(2 * H * n_pad * n_pad * D + 8 * H * n_pad * n_pad),
        transcendentals=int(2 * H * n_pad * n_pad),
        bytes_accessed=int(n_pad * n_pad                      # adj (int8), once
                           + (1 if hv_resident else nq) * n_pad * HD
                           * pv_dtype.itemsize                # hv
                           + nq * n_pad * H * 4               # f2^T per row tile
                           + nk * n_pad * H * 4               # f1 per col tile
                           + n_pad * HD * 4),                 # output write
    )

    out = pl.pallas_call(
        partial(gat_attention_kernel, alpha=alpha, num_heads=H, head_dim=D,
                kv_tile=TK, hv_resident=hv_resident, approx_recip=approx_recip),
        out_shape=jax.ShapeDtypeStruct((n_pad, HD), jnp.float32),
        grid_spec=pltpu.PrefetchScalarGridSpec(
            num_scalar_prefetch=0,
            grid=(nq, nk),
            in_specs=[
                pl.BlockSpec((TQ, TK), lambda i, k: (i, k)),   # adj tile (int8)
                pl.BlockSpec((TQ, H), lambda i, k: (i, 0)),    # f1 rows
                pl.BlockSpec((H, TK), lambda i, k: (0, k)),    # f2^T cols
                hv_spec,                                       # h values (all heads)
            ],
            out_specs=pl.BlockSpec((TQ, HD), lambda i, k: (i, 0)),
            scratch_shapes=[
                pltpu.VMEM((TQ, H), jnp.float32),    # running max  m
                pltpu.VMEM((TQ, H), jnp.float32),    # running sum  l
                pltpu.VMEM((TQ, HD), jnp.float32),   # running acc
            ],
        ),
        compiler_params=pltpu.CompilerParams(
            dimension_semantics=("parallel", "arbitrary"),
            # Explicit limit: v5e's scoped default is only 16 MiB; stay < v7x's
            # 64 MiB physical.
            vmem_limit_bytes=48 * 1024 * 1024),
        cost_estimate=cost,
    )(adj_p, f1, f2t, h_all)

    return out[:N] if n_pad != N else out


# ---------------------------------------------------------------------------
# Reference + test harness
# ---------------------------------------------------------------------------
def xavier_uniform(key, shape, gain):
    fan_in, fan_out = shape[0], shape[1]
    bound = gain * jnp.sqrt(6.0 / (fan_in + fan_out))
    return jax.random.uniform(key, shape, jnp.float32, -bound, bound)


def reference_multi_head_gat(x, adj, W, A, alpha=0.2):
    """Pure-JAX reference mirroring the PyTorch forward (eval mode)."""
    outs = []
    for h_idx in range(W.shape[0]):
        h = x @ W[h_idx]
        D = h.shape[1]
        f1 = h @ A[h_idx, :D, :]
        f2 = h @ A[h_idx, D:, :]
        e = f1 + f2.T
        e = jnp.where(e > 0, e, alpha * e)
        att = jnp.where(adj > 0, e, jnp.full_like(e, NEG_BIG))
        att = jax.nn.softmax(att, axis=1)
        outs.append(att @ h)
    return jnp.concatenate(outs, axis=1)


def _make_inputs(key, N, in_features, num_heads, head_dim, gain=1.414):
    k_x, k_adj, *k_params = jax.random.split(key, 2 + 2 * num_heads)
    x = jax.random.normal(k_x, (N, in_features), jnp.float32)
    adj = (jax.random.uniform(k_adj, (N, N)) > 0.5).astype(jnp.float32)
    adj = jnp.maximum(adj, jnp.eye(N, dtype=jnp.float32))  # self-loops
    # Hoisted (done once, reused) int8 adjacency -- the form the kernel wants.
    adj_i8 = (adj > 0).astype(jnp.int8)
    W = jnp.stack([xavier_uniform(k_params[i], (in_features, head_dim), gain)
                   for i in range(num_heads)])                     # (H, Fin, D)
    A = jnp.stack([xavier_uniform(k_params[num_heads + i],
                                  (2 * head_dim, 1), gain)
                   for i in range(num_heads)])                     # (H, 2D, 1)
    return x, adj_i8, W, A


if __name__ == "__main__":
    alpha = 0.2

    # ---- Small case: N=8, Fin=16, out=12, heads=3 (single-block path) ----
    x, adj, W, A = _make_inputs(jax.random.PRNGKey(0), 8, 16, 3, 4)
    ref = reference_multi_head_gat(x, adj, W, A, alpha=alpha)

    out_f32 = multi_head_gat(x, adj, W, A, alpha=alpha, pv_dtype=jnp.float32)
    jax.block_until_ready(out_f32)
    assert out_f32.shape == (8, 12)
    assert jnp.allclose(out_f32, ref, atol=1e-5, rtol=1e-5), "small f32 mismatch"

    out_bf = multi_head_gat(x, adj, W, A, alpha=alpha)          # bf16 PV path
    jax.block_until_ready(out_bf)
    # Error budget is the intentional bf16 MXU inputs (perf review item 1).
    assert float(jnp.max(jnp.abs(out_bf - ref))) < 3e-2, "small bf16 mismatch"

    # ---- Medium case: N=1024, Fin=64, heads=4, D=16 (tiled path, grid 4x1) --
    x, adj, W, A = _make_inputs(jax.random.PRNGKey(0), 1024, 64, 4, 16)
    ref = reference_multi_head_gat(x, adj, W, A, alpha=alpha)

    out_f32 = multi_head_gat(x, adj, W, A, alpha=alpha, pv_dtype=jnp.float32)
    jax.block_until_ready(out_f32)
    assert out_f32.shape == (1024, 64)
    assert jnp.allclose(out_f32, ref, atol=1e-4, rtol=1e-4), "tiled f32 mismatch"

    out_bf = multi_head_gat(x, adj, W, A, alpha=alpha)          # bf16 PV path
    jax.block_until_ready(out_bf)
    assert out_bf.shape == (1024, 64)
    assert float(jnp.max(jnp.abs(out_bf - ref))) < 3e-2, "tiled bf16 mismatch"

    print("KERNEL_OK")
</pallas_src>

<mosaic_0001>
module attributes {stable_mosaic.version = 11 : i64} {
  func.func @gat_project_kernel(%arg0: i32, %arg1: memref<8x16xf32, #tpu.memory_space<vmem>>, %arg2: memref<16x12xf32, #tpu.memory_space<vmem>>, %arg3: memref<3x4xf32, #tpu.memory_space<vmem>>, %arg4: memref<3x4xf32, #tpu.memory_space<vmem>>, %arg5: memref<8x12xf32, #tpu.memory_space<vmem>>, %arg6: memref<8x3xf32, #tpu.memory_space<vmem>>, %arg7: memref<8x3xf32, #tpu.memory_space<vmem>>) attributes {dimension_semantics = [#tpu.dimension_semantics<parallel>], iteration_bounds = array<i64: 1>, scalar_prefetch = 0 : i64, scratch_operands = 0 : i64, tpu.core_type = #tpu.core_type<tc>, window_params = [{transform_indices = @transform_0, window_bounds = array<i64: 8, 16>}, {pipeline_mode = #tpu.pipeline_mode<synchronous>, transform_indices = @transform_1, window_bounds = array<i64: 16, 12>}, {pipeline_mode = #tpu.pipeline_mode<synchronous>, transform_indices = @transform_2, window_bounds = array<i64: 3, 4>}, {pipeline_mode = #tpu.pipeline_mode<synchronous>, transform_indices = @transform_3, window_bounds = array<i64: 3, 4>}, {transform_indices = @transform_4, window_bounds = array<i64: 8, 12>}, {transform_indices = @transform_5, window_bounds = array<i64: 8, 3>}, {transform_indices = @transform_6, window_bounds = array<i64: 8, 3>}]} {
    %c0 = arith.constant 0 : index
    %c0_0 = arith.constant 0 : index
    %0 = vector.load %arg1[%c0, %c0_0] : memref<8x16xf32, #tpu.memory_space<vmem>>, vector<8x16xf32>
    %c0_1 = arith.constant 0 : index
    %c0_2 = arith.constant 0 : index
    %1 = vector.load %arg2[%c0_1, %c0_2] : memref<16x12xf32, #tpu.memory_space<vmem>>, vector<16x12xf32>
    %cst = arith.constant dense<0.000000e+00> : vector<8x12xf32>
    %2 = tpu.matmul %0, %1, %cst {dimension_numbers = #tpu.dot_dimension_numbers<[1], [0], [0], [1], [0, 0, 1, 1], [], []>} : vector<8x16xf32>, vector<16x12xf32>, vector<8x12xf32> -> vector<8x12xf32>
    %c0_3 = arith.constant 0 : index
    %c0_4 = arith.constant 0 : index
    %3 = vector.load %arg5[%c0_3, %c0_4] : memref<8x12xf32, #tpu.memory_space<vmem>>, vector<8x12xf32>
    tpu.vector_store %arg5[%c0_3, %c0_4], %2 {strides = array<i32>} : memref<8x12xf32, #tpu.memory_space<vmem>>, vector<8x12xf32>,
    %4 = vector.extract_strided_slice %2 {offsets = [0, 0], sizes = [8, 4], strides = [1, 1]} : vector<8x12xf32> to vector<8x4xf32>
    %c0_5 = arith.constant 0 : index
    %c0_6 = arith.constant 0 : index
    %5 = vector.load %arg3[%c0_5, %c0_6] : memref<3x4xf32, #tpu.memory_space<vmem>>, vector<1x4xf32>
    %6 = vector.broadcast %5 : vector<1x4xf32> to vector<8x4xf32>
    %7 = arith.mulf %4, %6 : vector<8x4xf32>
    %cst_7 = arith.constant dense<0.000000e+00> : vector<8xf32>
    %8 = vector.multi_reduction <add>, %7, %cst_7 [1] : vector<8x4xf32> to vector<8xf32>
    %9 = vector.shape_cast %8 : vector<8xf32> to vector<8x1xf32>
    %c0_8 = arith.constant 0 : index
    %c0_9 = arith.constant 0 : index
    %10 = vector.load %arg6[%c0_8, %c0_9] : memref<8x3xf32, #tpu.memory_space<vmem>>, vector<8x1xf32>
    tpu.vector_store %arg6[%c0_8, %c0_9], %9 {strides = array<i32>} : memref<8x3xf32, #tpu.memory_space<vmem>>, vector<8x1xf32>,
    %c0_10 = arith.constant 0 : index
    %c0_11 = arith.constant 0 : index
    %11 = vector.load %arg4[%c0_10, %c0_11] : memref<3x4xf32, #tpu.memory_space<vmem>>, vector<1x4xf32>
    %12 = vector.broadcast %11 : vector<1x4xf32> to vector<8x4xf32>
    %13 = arith.mulf %4, %12 : vector<8x4xf32>
    %cst_12 = arith.constant dense<0.000000e+00> : vector<8xf32>
    %14 = vector.multi_reduction <add>, %13, %cst_12 [1] : vector<8x4xf32> to vector<8xf32>
    %15 = vector.shape_cast %14 : vector<8xf32> to vector<8x1xf32>
    %c0_13 = arith.constant 0 : index
    %c0_14 = arith.constant 0 : index
    %16 = vector.load %arg7[%c0_13, %c0_14] : memref<8x3xf32, #tpu.memory_space<vmem>>, vector<8x1xf32>
    tpu.vector_store %arg7[%c0_13, %c0_14], %15 {strides = array<i32>} : memref<8x3xf32, #tpu.memory_space<vmem>>, vector<8x1xf32>,
    %17 = vector.extract_strided_slice %2 {offsets = [0, 4], sizes = [8, 4], strides = [1, 1]} : vector<8x12xf32> to vector<8x4xf32>
    %c1 = arith.constant 1 : index
    %c0_15 = arith.constant 0 : index
    %18 = vector.load %arg3[%c1, %c0_15] : memref<3x4xf32, #tpu.memory_space<vmem>>, vector<1x4xf32>
    %19 = vector.broadcast %18 : vector<1x4xf32> to vector<8x4xf32>
    %20 = arith.mulf %17, %19 : vector<8x4xf32>
    %cst_16 = arith.constant dense<0.000000e+00> : vector<8xf32>
    %21 = vector.multi_reduction <add>, %20, %cst_16 [1] : vector<8x4xf32> to vector<8xf32>
    %22 = vector.shape_cast %21 : vector<8xf32> to vector<8x1xf32>
    %c0_17 = arith.constant 0 : index
    %c1_18 = arith.constant 1 : index
    %23 = vector.load %arg6[%c0_17, %c1_18] : memref<8x3xf32, #tpu.memory_space<vmem>>, vector<8x1xf32>
    tpu.vector_store %arg6[%c0_17, %c1_18], %22 {strides = array<i32>} : memref<8x3xf32, #tpu.memory_space<vmem>>, vector<8x1xf32>,
    %c1_19 = arith.constant 1 : index
    %c0_20 = arith.constant 0 : index
    %24 = vector.load %arg4[%c1_19, %c0_20] : memref<3x4xf32, #tpu.memory_space<vmem>>, vector<1x4xf32>
    %25 = vector.broadcast %24 : vector<1x4xf32> to vector<8x4xf32>
    %26 = arith.mulf %17, %25 : vector<8x4xf32>
    %cst_21 = arith.constant dense<0.000000e+00> : vector<8xf32>
    %27 = vector.multi_reduction <add>, %26, %cst_21 [1] : vector<8x4xf32> to vector<8xf32>
    %28 = vector.shape_cast %27 : vector<8xf32> to vector<8x1xf32>
    %c0_22 = arith.constant 0 : index
    %c1_23 = arith.constant 1 : index
    %29 = vector.load %arg7[%c0_22, %c1_23] : memref<8x3xf32, #tpu.memory_space<vmem>>, vector<8x1xf32>
    tpu.vector_store %arg7[%c0_22, %c1_23], %28 {strides = array<i32>} : memref<8x3xf32, #tpu.memory_space<vmem>>, vector<8x1xf32>,
    %30 = vector.extract_strided_slice %2 {offsets = [0, 8], sizes = [8, 4], strides = [1, 1]} : vector<8x12xf32> to vector<8x4xf32>
    %c2 = arith.constant 2 : index
    %c0_24 = arith.constant 0 : index
    %31 = vector.load %arg3[%c2, %c0_24] : memref<3x4xf32, #tpu.memory_space<vmem>>, vector<1x4xf32>
    %32 = vector.broadcast %31 : vector<1x4xf32> to vector<8x4xf32>
    %33 = arith.mulf %30, %32 : vector<8x4xf32>
    %cst_25 = arith.constant dense<0.000000e+00> : vector<8xf32>
    %34 = vector.multi_reduction <add>, %33, %cst_25 [1] : vector<8x4xf32> to vector<8xf32>
    %35 = vector.shape_cast %34 : vector<8xf32> to vector<8x1xf32>
    %c0_26 = arith.constant 0 : index
    %c2_27 = arith.constant 2 : index
    %36 = vector.load %arg6[%c0_26, %c2_27] : memref<8x3xf32, #tpu.memory_space<vmem>>, vector<8x1xf32>
    tpu.vector_store %arg6[%c0_26, %c2_27], %35 {strides = array<i32>} : memref<8x3xf32, #tpu.memory_space<vmem>>, vector<8x1xf32>,
    %c2_28 = arith.constant 2 : index
    %c0_29 = arith.constant 0 : index
    %37 = vector.load %arg4[%c2_28, %c0_29] : memref<3x4xf32, #tpu.memory_space<vmem>>, vector<1x4xf32>
    %38 = vector.broadcast %37 : vector<1x4xf32> to vector<8x4xf32>
    %39 = arith.mulf %30, %38 : vector<8x4xf32>
    %cst_30 = arith.constant dense<0.000000e+00> : vector<8xf32>
    %40 = vector.multi_reduction <add>, %39, %cst_30 [1] : vector<8x4xf32> to vector<8xf32>
    %41 = vector.shape_cast %40 : vector<8xf32> to vector<8x1xf32>
    %c0_31 = arith.constant 0 : index
    %c2_32 = arith.constant 2 : index
    %42 = vector.load %arg7[%c0_31, %c2_32] : memref<8x3xf32, #tpu.memory_space<vmem>>, vector<8x1xf32>
    tpu.vector_store %arg7[%c0_31, %c2_32], %41 {strides = array<i32>} : memref<8x3xf32, #tpu.memory_space<vmem>>, vector<8x1xf32>,
    return
  }
  func.func @transform_0(%arg0: i32) -> (i32, i32) {
    %c0_i32 = arith.constant 0 : i32
    %c0_i32_0 = arith.constant 0 : i32
    return %arg0, %c0_i32 : i32, i32
  }
  func.func @transform_1(%arg0: i32) -> (i32, i32) {
    %c0_i32 = arith.constant 0 : i32
    %c0_i32_0 = arith.constant 0 : i32
    %c0_i32_1 = arith.constant 0 : i32
    return %c0_i32, %c0_i32_0 : i32, i32
  }
  func.func @transform_2(%arg0: i32) -> (i32, i32) {
    %c0_i32 = arith.constant 0 : i32
    %c0_i32_0 = arith.constant 0 : i32
    %c0_i32_1 = arith.constant 0 : i32
    return %c0_i32, %c0_i32_0 : i32, i32
  }
  func.func @transform_3(%arg0: i32) -> (i32, i32) {
    %c0_i32 = arith.constant 0 : i32
    %c0_i32_0 = arith.constant 0 : i32
    %c0_i32_1 = arith.constant 0 : i32
    return %c0_i32, %c0_i32_0 : i32, i32
  }
  func.func @transform_4(%arg0: i32) -> (i32, i32) {
    %c0_i32 = arith.constant 0 : i32
    %c0_i32_0 = arith.constant 0 : i32
    return %arg0, %c0_i32 : i32, i32
  }
  func.func @transform_5(%arg0: i32) -> (i32, i32) {
    %c0_i32 = arith.constant 0 : i32
    %c0_i32_0 = arith.constant 0 : i32
    return %arg0, %c0_i32 : i32, i32
  }
  func.func @transform_6(%arg0: i32) -> (i32, i32) {
    %c0_i32 = arith.constant 0 : i32
    %c0_i32_0 = arith.constant 0 : i32
    return %arg0, %c0_i32 : i32, i32
  }
}

</mosaic_0001>

<llo_original>
// kernel: tpu_custom_call.1
$region0: #{tpu_custom_call.1}
  #allocation0 [shape = 'u32[]', space=smem, size = 0x4, offset = 0x4, fixed_abs, tag = 'smem constant byte address 0x4 - core index']
  #allocation1 [shape = 'u32[144,128]{1,0:T(1,128)}', space=vmem, size = 0x12000, scoped, tag = 'internal scratch']
  %s0 = inlined_call_operand.hbm [shape: f32[8,16], index: 0, kind: input, shape index: {}]
  %s1 = inlined_call_operand.hbm [shape: f32[16,12], index: 1, kind: input, shape index: {}]
  %s2 = inlined_call_operand.vmem [shape: f32[3,4], index: 2, kind: input, shape index: {}]
  %s3 = inlined_call_operand.vmem [shape: f32[3,4], index: 3, kind: input, shape index: {}]
  %s4 = inlined_call_operand.hbm [shape: f32[8,12], index: 4, kind: output, shape index: {0}]
  %s5 = inlined_call_operand.vmem [shape: f32[8,3], index: 5, kind: output, shape index: {1}]
  %s6 = inlined_call_operand.vmem [shape: f32[8,3], index: 6, kind: output, shape index: {2}]
  %7 = xla_tuple %s4, %s5, %s6
  %s8 = sld [smem:[#allocation0]]
  $region50: #{tpu_custom_call.1} parent=0
    _
  %s10 = ssub.s32 1, %s8
  %s11 = scalar_select 0, %s10, %s8
  $region1: #{tpu_custom_call.1} parent=0
    #allocation2 [shape = 'u8[4096]{0}', space=vmem, size = 0x1000, scoped, tag = 'input window, operand 0, single buffered']
    #allocation3 [shape = 's32[1]{0}', space=sflag, size = 0x4, scoped, tag = 'scoped memory for tpu_custom_call.1']
    #allocation4 [shape = 's32[1]{0}', space=sflag, size = 0x4, scoped, tag = 'scoped memory for tpu_custom_call.1']
    #allocation5 [shape = 'u8[8192]{0}', space=vmem, size = 0x2000, scoped, tag = 'input window, operand 1, single buffered']
    #allocation6 [shape = 's32[1]{0}', space=sflag, size = 0x4, scoped, tag = 'scoped memory for tpu_custom_call.1']
    #allocation7 [shape = 'u8[4096]{0}', space=vmem, size = 0x1000, scoped, tag = 'output window, operand 0, single buffered']
    %12 = vsyncpa [#allocation3], 0
    %13 = vsyncpa [#allocation6], 0
    %14 = vsyncpa [#allocation4], 0
    // Predicated region
    $region2: #{tpu_custom_call.1} parent=1 // pred_check
      _
    $region3: #{tpu_custom_call.1} parent=1 // pred_check_branch
      %16 = sbr.rel (0) target = $region5
    $region4: #{tpu_custom_call.1} parent=1 // pred_region
      %s18 = ssub.s32 128, 128
      %19 = vsyncadd [#allocation3], %s18
      %s21 = sshll.u32 [#allocation2], 4
      %s22 = int_to_ptr.vmem [resolvable:$true] %s21
      %24 = dma.hbm_to_vmem [thread:$0]  %s0, 128, %s22, [#allocation3]
    $region5: #{tpu_custom_call.1} parent=1 // pred_fallthru
      _
    // Predicated region
    $region6: #{tpu_custom_call.1} parent=1 // pred_check
      _
    $region7: #{tpu_custom_call.1} parent=1 // pred_check_branch
      %26 = sbr.rel (0) target = $region9
    $region8: #{tpu_custom_call.1} parent=1 // pred_region
      %s28 = ssub.s32 256, 256
      %29 = vsyncadd [#allocation6], %s28
      %s30 = sshll.u32 [#allocation5], 4
      %s31 = int_to_ptr.vmem [resolvable:$true] %s30
      %36 = dma.hbm_to_vmem [thread:$0]  %s1, 256, %s31, [#allocation6], 128, 128, 8
    $region9: #{tpu_custom_call.1} parent=1 // pred_fallthru
      _
    // Predicated region
    $region10: #{tpu_custom_call.1} parent=1 // pred_check
      _
    $region11: #{tpu_custom_call.1} parent=1 // pred_check_branch
      %38 = sbr.rel (0) target = $region13
    $region12: #{tpu_custom_call.1} parent=1 // pred_region
      _
    $region13: #{tpu_custom_call.1} parent=1 // pred_fallthru
      _
    // Predicated region
    $region14: #{tpu_custom_call.1} parent=1 // pred_check
      _
    $region15: #{tpu_custom_call.1} parent=1 // pred_check_branch
      %40 = sbr.rel (0) target = $region17
    $region16: #{tpu_custom_call.1} parent=1 // pred_region
      _
    $region17: #{tpu_custom_call.1} parent=1 // pred_fallthru
      _
    // Predicated region
    $region18: #{tpu_custom_call.1} parent=1 // pred_check
      _
    $region19: #{tpu_custom_call.1} parent=1 // pred_check_branch
      %42 = sbr.rel (0) target = $region21
    $region20: #{tpu_custom_call.1} parent=1 // pred_region
      %43 = dma.done [#allocation3], 128
    $region21: #{tpu_custom_call.1} parent=1 // pred_fallthru
      _
    // Predicated region
    $region22: #{tpu_custom_call.1} parent=1 // pred_check
      _
    $region23: #{tpu_custom_call.1} parent=1 // pred_check_branch
      %45 = sbr.rel (0) target = $region25
    $region24: #{tpu_custom_call.1} parent=1 // pred_region
      %46 = dma.done [#allocation6], 256
    $region25: #{tpu_custom_call.1} parent=1 // pred_fallthru
      _
    %v47 = vld [vmem:[#allocation2] sm:$0xff]
    %v48 = vld [vmem:[#allocation5] sm:$0xff]
    %v49 = vld [vmem:[#allocation5 + $0x8] sm:$0xff]
    %vm50 = vcmask 130048
    %v52 = vsel %vm50, %v47, 0
    %54 = vmatprep.subr.mxu0 0.0
    %55 = vmatpush1.msra.mxu0 %v48
    %56 = vmatprep.subr.mxu0 0.0
    %57 = vmatpush1.msra.mxu0 %v49
    %58 = vmatprep.subr.mxu0 0.0
    %59 = vmatpush1.msra.mxu0 0.0
    %60 = vmatprep.subr.mxu0 0.0
    %61 = vmatpush1.msra.mxu0 0.0
    %62 = vmatprep.subr.mxu0 0.0
    %63 = vmatpush1.msra.mxu0 0.0
    %64 = vmatprep.subr.mxu0 0.0
    %65 = vmatpush1.msra.mxu0 0.0
    %66 = vmatprep.subr.mxu0 0.0
    %67 = vmatpush1.msra.mxu0 0.0
    %68 = vmatprep.subr.mxu0 0.0
    %69 = vmatpush1.msra.mxu0 0.0
    %70 = vmatprep.subr.mxu0 0.0
    %71 = vmatpush1.msra.mxu0 0.0
    %72 = vmatprep.subr.mxu0 0.0
    %73 = vmatpush1.msra.mxu0 0.0
    %74 = vmatprep.subr.mxu0 0.0
    %75 = vmatpush1.msra.mxu0 0.0
    %76 = vmatprep.subr.mxu0 0.0
    %77 = vmatpush1.msra.mxu0 0.0
    %78 = vmatprep.subr.mxu0 0.0
    %79 = vmatpush1.msra.mxu0 0.0
    %80 = vmatprep.subr.mxu0 0.0
    %81 = vmatpush1.msra.mxu0 0.0
    %82 = vmatprep.subr.mxu0 0.0
    %83 = vmatpush1.msra.mxu0 0.0
    %84 = vmatprep.subr.mxu0 0.0
    %85 = vmatpush1.msra.mxu0 0.0
    %86 = vmatprep.subr.mxu0 0.0
    %87 = vmatpush1.msra.mxu0 0.0
    %88 = vmatprep.subr.mxu0 0.0
    %89 = vmatpush1.msra.mxu0 0.0
    %90 = vmatprep.subr.mxu0 0.0
    %91 = vmatpush1.msra.mxu0 0.0
    %92 = vmatprep.subr.mxu0 0.0
    %93 = vmatpush1.msra.mxu0 0.0
    %94 = vmatprep.subr.mxu0 0.0
    %95 = vmatpush1.msra.mxu0 0.0
    %96 = vmatprep.subr.mxu0 0.0
    %97 = vmatpush1.msra.mxu0 0.0
    %98 = vmatprep.subr.mxu0 0.0
    %99 = vmatpush1.msra.mxu0 0.0
    %100 = vmatprep.subr.mxu0 0.0
    %101 = vmatpush1.msra.mxu0 0.0
    %102 = vmatprep.subr.mxu0 0.0
    %103 = vmatpush1.msra.mxu0 0.0
    %104 = vmatprep.subr.mxu0 0.0
    %105 = vmatpush1.msra.mxu0 0.0
    %106 = vmatprep.subr.mxu0 0.0
    %107 = vmatpush1.msra.mxu0 0.0
    %108 = vmatprep.subr.mxu0 0.0
    %109 = vmatpush1.msra.mxu0 0.0
    %110 = vmatprep.subr.mxu0 0.0
    %111 = vmatpush1.msra.mxu0 0.0
    %112 = vmatprep.subr.mxu0 0.0
    %113 = vmatpush1.msra.mxu0 0.0
    %114 = vmatprep.subr.mxu0 0.0
    %115 = vmatpush1.msra.mxu0 0.0
    %116 = vmatprep.subr.mxu0 0.0
    %117 = vmatpush1.msra.mxu0 0.0
    %118 = vmatprep.mubr.f32.mxu0 0.0
    %119 = vmatmul.mubr.f32.gmra.mrb[0].mxu0 %v52
    %v120 = vpop.f32.mrb[0].mxu0
    %v121 = vadd.f32 0.0, %v120
    %v122 = vpop.f32.mrb[0].mxu0
    %123 = vdwg.mxu0
    %vm124 = vcmask 97280
    %125 = vst.msk [vmem:[#allocation7] sm:$0xff] %vm124, %v121
    %v126 = vld [vmem:[%s2] sm:$0x1]
    %v127 = vlaneseq
    %v128 = vshrl.u32 %v127, 7
    %v129 = vsub.s32 0, %v128
    %v130 = vrot.slane %v126, %v129
    %v131 = vmul.f32 %v121, %v130
    %vm132 = vcmask 31744
    %v133 = vsel %vm132, %v131, 0.0
    %134 = vadd.xlane.f32.xlu0 %v133
    %v135 = vpop.xlane.xlu0 %134
    %vm136 = vcmask 7168
    %137 = vst.msk [vmem:[%s5] sm:$0xff] %vm136, %v135
    %v138 = vld [vmem:[%s3] sm:$0x1]
    %v139 = vlaneseq
    %v140 = vshrl.u32 %v139, 7
    %v141 = vsub.s32 0, %v140
    %v142 = vrot.slane %v138, %v141
    %v143 = vmul.f32 %v121, %v142
    %v144 = vsel %vm132, %v143, 0.0
    %145 = vadd.xlane.f32.xlu0 %v144
    %v146 = vpop.xlane.xlu0 %145
    %147 = vst.msk [vmem:[%s6] sm:$0xff] %vm136, %v146
    %v148 = vld [vmem:[%s2 + $0x1] sm:$0x1]
    %v149 = vlaneseq
    %v150 = vshrl.u32 %v149, 7
    %v151 = vsub.s32 0, %v150
    %v152 = vrot.slane %v148, %v151
    %154 = vrot.lane.b32.xlu0 %v152, 4
    %v155 = vpop.permute.xlu0 %154
    %v157 = vmul.f32 %v121, %v155
    %159 = vrot.lane.b32.xlu0 %v157, 124
    %v160 = vpop.permute.xlu0 %159
    %v162 = vsel %vm132, %v160, 0.0
    %163 = vadd.xlane.f32.xlu0 %v162
    %v164 = vpop.xlane.xlu0 %163
    %vm165 = vcmask 15368
    %166 = vst.msk [vmem:[%s5] sm:$0xff] %vm165, %v164
    %v167 = vld [vmem:[%s3 + $0x1] sm:$0x1]
    %v168 = vlaneseq
    %v169 = vshrl.u32 %v168, 7
    %v170 = vsub.s32 0, %v169
    %v171 = vrot.slane %v167, %v170
    %173 = vrot.lane.b32.xlu0 %v171, 4
    %v174 = vpop.permute.xlu0 %173
    %v176 = vmul.f32 %v121, %v174
    %178 = vrot.lane.b32.xlu0 %v176, 124
    %v179 = vpop.permute.xlu0 %178
    %v181 = vsel %vm132, %v179, 0.0
    %182 = vadd.xlane.f32.xlu0 %v181
    %v183 = vpop.xlane.xlu0 %182
    %184 = vst.msk [vmem:[%s6] sm:$0xff] %vm165, %v183
    %v185 = vld [vmem:[%s2 + $0x2] sm:$0x1]
    %v186 = vlaneseq
    %v187 = vshrl.u32 %v186, 7
    %v188 = vsub.s32 0, %v187
    %v189 = vrot.slane %v185, %v188
    %191 = vrot.lane.b32.xlu0 %v189, 8
    %v192 = vpop.permute.xlu0 %191
    %v194 = vmul.f32 %v121, %v192
    %196 = vrot.lane.b32.xlu0 %v194, 120
    %v197 = vpop.permute.xlu0 %196
    %v199 = vsel %vm132, %v197, 0.0
    %200 = vadd.xlane.f32.xlu0 %v199
    %v201 = vpop.xlane.xlu0 %200
    %vm202 = vcmask 23568
    %203 = vst.msk [vmem:[%s5] sm:$0xff] %vm202, %v201
    %v204 = vld [vmem:[%s3 + $0x2] sm:$0x1]
    %v205 = vlaneseq
    %v206 = vshrl.u32 %v205, 7
    %v207 = vsub.s32 0, %v206
    %v208 = vrot.slane %v204, %v207
    %210 = vrot.lane.b32.xlu0 %v208, 8
    %v211 = vpop.permute.xlu0 %210
    %v213 = vmul.f32 %v121, %v211
    %215 = vrot.lane.b32.xlu0 %v213, 120
    %v216 = vpop.permute.xlu0 %215
    %v218 = vsel %vm132, %v216, 0.0
    %219 = vadd.xlane.f32.xlu0 %v218
    %v220 = vpop.xlane.xlu0 %219
    %221 = vst.msk [vmem:[%s6] sm:$0xff] %vm202, %v220
    // Predicated region
    $region26: #{tpu_custom_call.1} parent=1 // pred_check
      _
    $region27: #{tpu_custom_call.1} parent=1 // pred_check_branch
      %223 = sbr.rel (0) target = $region29
    $region28: #{tpu_custom_call.1} parent=1 // pred_region
      %s225 = ssub.s32 128, 128
      %226 = vsyncadd [#allocation4], %s225
      %s228 = sshll.u32 [#allocation7], 4
      %s229 = int_to_ptr.vmem [resolvable:$true] %s228
      %231 = dma.vmem_to_hbm [thread:$0]  %s229, 128, %s4, [#allocation4]
    $region29: #{tpu_custom_call.1} parent=1 // pred_fallthru
      _
    // Predicated region
    $region30: #{tpu_custom_call.1} parent=1 // pred_check
      _
    $region31: #{tpu_custom_call.1} parent=1 // pred_check_branch
      %233 = sbr.rel (0) target = $region33
    $region32: #{tpu_custom_call.1} parent=1 // pred_region
      _
    $region33: #{tpu_custom_call.1} parent=1 // pred_fallthru
      _
    // Predicated region
    $region34: #{tpu_custom_call.1} parent=1 // pred_check
      _
    $region35: #{tpu_custom_call.1} parent=1 // pred_check_branch
      %235 = sbr.rel (0) target = $region37
    $region36: #{tpu_custom_call.1} parent=1 // pred_region
      _
    $region37: #{tpu_custom_call.1} parent=1 // pred_fallthru
      _
    // Predicated region
    $region38: #{tpu_custom_call.1} parent=1 // pred_check
      _
    $region39: #{tpu_custom_call.1} parent=1 // pred_check_branch
      %237 = sbr.rel (0) target = $region41
    $region40: #{tpu_custom_call.1} parent=1 // pred_region
      %238 = dma.done [#allocation4], 128
    $region41: #{tpu_custom_call.1} parent=1 // pred_fallthru
      _
    // Predicated region
    $region42: #{tpu_custom_call.1} parent=1 // pred_check
      _
    $region43: #{tpu_custom_call.1} parent=1 // pred_check_branch
      %240 = sbr.rel (0) target = $region45
    $region44: #{tpu_custom_call.1} parent=1 // pred_region
      _
    $region45: #{tpu_custom_call.1} parent=1 // pred_fallthru
      _
    // Predicated region
    $region46: #{tpu_custom_call.1} parent=1 // pred_check
      _
    $region47: #{tpu_custom_call.1} parent=1 // pred_check_branch
      %242 = sbr.rel (0) target = $region49
    $region48: #{tpu_custom_call.1} parent=1 // pred_region
      _
    $region49: #{tpu_custom_call.1} parent=1 // pred_fallthru
      _
    %243 = vsyncpa [#allocation3], 1
    %244 = vsyncpa [#allocation6], 1
    %245 = vsyncpa [#allocation4], 1

</llo_original>
